<compile_context>
chip_gen: v6e
topology: v6e:2x2x1
jax: 0.10.0
libtpu: 0.0.40
codegen_flags: <defaults>
</compile_context>

<pallas_src>
import math
import functools

import jax
import jax.numpy as jnp
from jax import lax
from jax.experimental import pallas as pl
from jax.experimental.pallas import tpu as pltpu


# ----------------------------------------------------------------------------
# Parameter setup (plain JAX glue): identical math to the PyTorch __init__.
# ----------------------------------------------------------------------------
def make_pos_embedding(emb_size: int, maxlen: int = 1000) -> jnp.ndarray:
    den = jnp.exp(-jnp.arange(0, emb_size, 2, dtype=jnp.float32)
                  * (math.log(10000.0) / emb_size))                    # (emb/2,)
    pos = jnp.arange(0, maxlen, dtype=jnp.float32).reshape(maxlen, 1)  # (maxlen, 1)
    ang = pos * den                                                    # (maxlen, emb/2)
    pe = jnp.zeros((maxlen, emb_size), dtype=jnp.float32)
    pe = pe.at[:, 0::2].set(jnp.sin(ang))
    pe = pe.at[:, 1::2].set(jnp.cos(ang))
    return pe[:, None, :]                                              # (maxlen, 1, emb)


# ----------------------------------------------------------------------------
# Stateless counter-based keep-mask.  Element id is global (seq, batch, emb), so the
# mask is independent of the tiling; usable both in-kernel and as a pure-JAX reference.
# ----------------------------------------------------------------------------
def _keep_mask(rows_start, shape, batch: int, emb: int, seed, p: float):
    s_idx = lax.broadcasted_iota(jnp.int32, shape, 0)
    b_idx = lax.broadcasted_iota(jnp.int32, shape, 1)
    e_idx = lax.broadcasted_iota(jnp.int32, shape, 2)
    idx = ((rows_start + s_idx).astype(jnp.uint32) * jnp.uint32(batch)
           + b_idx.astype(jnp.uint32)) * jnp.uint32(emb) + e_idx.astype(jnp.uint32)
    # Cheap integer hash (2 vector multiplies + xor-shifts; VPU only).
    h = idx + seed.astype(jnp.uint32) * jnp.uint32(0x9E3779B1)
    h = h ^ (h >> 16)
    h = h * jnp.uint32(0x21F0AAAD)
    h = h ^ (h >> 15)
    h = h * jnp.uint32(0x735A2D97)
    h = h ^ (h >> 15)
    # Signed compare on the low 31 bits (avoids unsigned-compare lowering corner cases).
    h31 = (h & jnp.uint32(0x7FFFFFFF)).astype(jnp.int32)
    thresh = jnp.int32(min(int(round(p * float(2 ** 31))), 2 ** 31 - 1))
    return h31 >= thresh


# ----------------------------------------------------------------------------
# Pallas kernel: (TS, B, E) tile of token embeddings + (TS, 1, E) tile of pos
# embeddings (broadcast over batch in VMEM) + inverted dropout.
# ----------------------------------------------------------------------------
def _pos_enc_kernel(seed_ref, x_ref, pe_ref, o_ref, *,
                    p: float, ts: int, batch: int, emb: int):
    x = x_ref[...].astype(jnp.float32)        # (TS, B, E)
    pe = pe_ref[...].astype(jnp.float32)      # (TS, 1, E) -> broadcast over batch
    y = x + pe
    if p > 0.0:
        rows_start = pl.program_id(0) * ts    # global seq offset of this tile
        keep = _keep_mask(rows_start, y.shape, batch, emb, seed_ref[0], p)
        y = jnp.where(keep, y * (1.0 / (1.0 - p)), 0.0)
    o_ref[...] = y.astype(o_ref.dtype)


# ----------------------------------------------------------------------------
# Tile-size selection: ~4 MiB per HBM stream, capped so the double-buffered,
# layout-padded VMEM footprint stays within budget; >=2 grid steps when possible.
# ----------------------------------------------------------------------------
def _round_up(x: int, m: int) -> int:
    return ((x + m - 1) // m) * m


def _sublane_multiple(itemsize: int) -> int:
    return {4: 8, 2: 16, 1: 32}.get(itemsize, 8)


def _choose_ts(S: int, B: int, E: int, x_itemsize: int, pe_itemsize: int,
               out_itemsize: int,
               target_stream_bytes: int = 4 * 1024 * 1024,
               vmem_budget_bytes: int = 20 * 1024 * 1024) -> int:
    e_pad = _round_up(E, 128)

    def row_vmem(itemsize, rows):   # padded VMEM bytes per seq row
        return _round_up(rows, _sublane_multiple(itemsize)) * e_pad * itemsize

    per_row_vmem = (row_vmem(x_itemsize, B) + row_vmem(out_itemsize, B)
                    + row_vmem(pe_itemsize, 1))
    ts_vmem = max(vmem_budget_bytes // (2 * per_row_vmem), 1)   # x2: double-buffered
    row_hbm = max(B * E * max(x_itemsize, out_itemsize), 1)
    ts_hbm = max(target_stream_bytes // row_hbm, 1)
    ts = min(S, ts_vmem, ts_hbm)
    if S >= 16:
        # Guarantee >=2 grid steps so v7x can shard the seq axis across its 2 TCs.
        ts = min(ts, _round_up(-(-S // 2), 8))
    if ts >= 8:
        ts = (ts // 8) * 8
    return max(min(ts, S), 1)


def positional_encoding_forward(token_embedding: jnp.ndarray,
                                pos_embedding: jnp.ndarray,
                                *,
                                dropout_p: float = 0.0,
                                training: bool = True,
                                seed: int = 0) -> jnp.ndarray:
    """dropout(token_embedding + pos_embedding[:seq_len]) via a Pallas TPU kernel."""
    S, B, E = token_embedding.shape
    assert pos_embedding.ndim == 3 and pos_embedding.shape[1] == 1
    assert pos_embedding.shape[2] == E and pos_embedding.shape[0] >= S

    p = float(dropout_p) if (training and dropout_p > 0.0) else 0.0
    dtype = token_embedding.dtype

    TS = _choose_ts(S, B, E,
                    token_embedding.dtype.itemsize,
                    pos_embedding.dtype.itemsize,
                    jnp.dtype(dtype).itemsize)
    grid = (pl.cdiv(S, TS),)

    kernel = functools.partial(_pos_enc_kernel, p=p, ts=TS, batch=B, emb=E)
    seed_arr = jnp.array([seed], dtype=jnp.int32)

    grid_spec = pltpu.PrefetchScalarGridSpec(
        num_scalar_prefetch=1,
        grid=grid,
        in_specs=[
            pl.BlockSpec((TS, B, E), lambda i, seed: (i, 0, 0)),  # token_embedding
            pl.BlockSpec((TS, 1, E), lambda i, seed: (i, 0, 0)),  # pos_embedding (no tile!)
        ],
        out_specs=pl.BlockSpec((TS, B, E), lambda i, seed: (i, 0, 0)),
    )

    out = pl.pallas_call(
        kernel,
        out_shape=jax.ShapeDtypeStruct((S, B, E), dtype),
        grid_spec=grid_spec,
        compiler_params=pltpu.CompilerParams(
            dimension_semantics=("parallel",),      # independent seq tiles
            vmem_limit_bytes=32 * 1024 * 1024,      # safe on v7x's 64 MiB physical VMEM
        ),
    )(seed_arr, token_embedding, pos_embedding)
    return out


if __name__ == "__main__":
    emb_size = 32
    dropout = 0.1
    maxlen = 1000
    seq_len = 8
    batch = 2

    key = jax.random.PRNGKey(0)
    token_embedding = jax.random.normal(key, (seq_len, batch, emb_size), dtype=jnp.float32)
    pos_embedding = make_pos_embedding(emb_size, maxlen)

    ref = token_embedding + pos_embedding[:seq_len]

    # 1) eval-mode (dropout off): must match the pure-JAX reference.
    out_eval = positional_encoding_forward(
        token_embedding, pos_embedding, dropout_p=dropout, training=False)
    out_eval = jax.block_until_ready(out_eval)
    assert out_eval.shape == (seq_len, batch, emb_size)
    assert jnp.allclose(out_eval, ref, atol=1e-6), "mismatch vs reference (eval path)"

    # 2) training-mode: mask is reproducible in plain JAX via the same hash.
    seed = 42
    out_train = positional_encoding_forward(
        token_embedding, pos_embedding, dropout_p=dropout, training=True, seed=seed)
    out_train = jax.block_until_ready(out_train)
    assert out_train.shape == (seq_len, batch, emb_size)
    assert bool(jnp.all(jnp.isfinite(out_train)))

    keep = _keep_mask(0, (seq_len, batch, emb_size), batch, emb_size,
                      jnp.int32(seed), dropout)
    scale = 1.0 / (1.0 - dropout)
    ref_train = jnp.where(keep, ref * scale, 0.0)
    assert jnp.allclose(out_train, ref_train, atol=1e-6), "mismatch vs reference (train path)"

    drop_frac = float(jnp.mean((out_train == 0.0).astype(jnp.float32)))
    assert 0.0 < drop_frac < 0.5, f"implausible dropout rate {drop_frac}"

    print("KERNEL_OK")
</pallas_src>

<mosaic_0001>
module attributes {stable_mosaic.version = 11 : i64} {
  func.func @_pos_enc_kernel(%arg0: i32, %arg1: memref<1xi32, #tpu.memory_space<smem>>, %arg2: memref<8x2x32xf32, #tpu.memory_space<vmem>>, %arg3: memref<8x1x32xf32, #tpu.memory_space<vmem>>, %arg4: memref<8x2x32xf32, #tpu.memory_space<vmem>>) attributes {dimension_semantics = [#tpu.dimension_semantics<parallel>], iteration_bounds = array<i64: 1>, scalar_prefetch = 1 : i64, scratch_operands = 0 : i64, tpu.core_type = #tpu.core_type<tc>, window_params = [{transform_indices = @transform_0, window_bounds = array<i64: 8, 2, 32>}, {transform_indices = @transform_1, window_bounds = array<i64: 8, 1, 32>}, {transform_indices = @transform_2, window_bounds = array<i64: 8, 2, 32>}]} {
    %c0 = arith.constant 0 : index
    %c0_0 = arith.constant 0 : index
    %c0_1 = arith.constant 0 : index
    %0 = vector.load %arg2[%c0, %c0_0, %c0_1] : memref<8x2x32xf32, #tpu.memory_space<vmem>>, vector<8x2x32xf32>
    %c0_2 = arith.constant 0 : index
    %c0_3 = arith.constant 0 : index
    %c0_4 = arith.constant 0 : index
    %1 = vector.load %arg3[%c0_2, %c0_3, %c0_4] : memref<8x1x32xf32, #tpu.memory_space<vmem>>, vector<8x1x32xf32>
    %2 = vector.broadcast %1 : vector<8x1x32xf32> to vector<8x2x32xf32>
    %3 = arith.addf %0, %2 : vector<8x2x32xf32>
    %c0_5 = arith.constant 0 : index
    %c0_6 = arith.constant 0 : index
    %c0_7 = arith.constant 0 : index
    %4 = vector.load %arg4[%c0_5, %c0_6, %c0_7] : memref<8x2x32xf32, #tpu.memory_space<vmem>>, vector<8x2x32xf32>
    tpu.vector_store %arg4[%c0_5, %c0_6, %c0_7], %3 {strides = array<i32>} : memref<8x2x32xf32, #tpu.memory_space<vmem>>, vector<8x2x32xf32>,
    return
  }
  func.func @transform_0(%arg0: i32, %arg1: memref<1xi32, #tpu.memory_space<smem>>) -> (i32, i32, i32) {
    %c0_i32 = arith.constant 0 : i32
    %c0_i32_0 = arith.constant 0 : i32
    %c0_i32_1 = arith.constant 0 : i32
    return %arg0, %c0_i32, %c0_i32_0 : i32, i32, i32
  }
  func.func @transform_1(%arg0: i32, %arg1: memref<1xi32, #tpu.memory_space<smem>>) -> (i32, i32, i32) {
    %c0_i32 = arith.constant 0 : i32
    %c0_i32_0 = arith.constant 0 : i32
    %c0_i32_1 = arith.constant 0 : i32
    return %arg0, %c0_i32, %c0_i32_0 : i32, i32, i32
  }
  func.func @transform_2(%arg0: i32, %arg1: memref<1xi32, #tpu.memory_space<smem>>) -> (i32, i32, i32) {
    %c0_i32 = arith.constant 0 : i32
    %c0_i32_0 = arith.constant 0 : i32
    %c0_i32_1 = arith.constant 0 : i32
    return %arg0, %c0_i32, %c0_i32_0 : i32, i32, i32
  }
}

</mosaic_0001>

<llo_original>
// kernel: tpu_custom_call.1
$region0: #{tpu_custom_call.1}
  #allocation0 [shape = 'u32[]', space=smem, size = 0x4, offset = 0x4, fixed_abs, tag = 'smem constant byte address 0x4 - core index']
  #allocation1 [shape = 'u32[144,128]{1,0:T(1,128)}', space=vmem, size = 0x12000, scoped, tag = 'internal scratch']
  #allocation2 [shape = 's32[1]{0}', space=sflag, size = 0x4, scoped, tag = 'scoped memory for tpu_custom_call.1']
  #allocation3 [shape = 's32[1]{0:T(128)S(6)}', space=smem, size = 0x200, scoped, tag = 'prefetched SMEM operand 0']
  %s0 = inlined_call_operand.<no memory space> [shape: s32[1], index: 0, kind: input, shape index: {}]
  %s1 = inlined_call_operand.vmem [shape: f32[8,2,32], index: 1, kind: input, shape index: {}]
  %s2 = inlined_call_operand.vmem [shape: f32[1000,1,32], index: 2, kind: input, shape index: {}]
  %s3 = inlined_call_operand.hbm [shape: f32[8,2,32], index: 3, kind: output, shape index: {}]
  %s4 = sld [smem:[#allocation0]]
  $region18: #{tpu_custom_call.1} parent=0
    _
  %s6 = ssub.s32 1, %s4
  %s7 = scalar_select 0, %s6, %s4
  %8 = sst [smem:[#allocation3]] %s0
  $region1: #{tpu_custom_call.1} parent=0
    #allocation4 [shape = 'u8[8192]{0}', space=vmem, size = 0x2000, scoped, tag = 'output window, operand 0, single buffered']
    #allocation5 [shape = 's32[1]{0}', space=sflag, size = 0x4, scoped, tag = 'scoped memory for tpu_custom_call.1']
    %9 = vsyncpa [#allocation5], 0
    // Predicated region
    $region2: #{tpu_custom_call.1} parent=1 // pred_check
      _
    $region3: #{tpu_custom_call.1} parent=1 // pred_check_branch
      %11 = sbr.rel (0) target = $region5
    $region4: #{tpu_custom_call.1} parent=1 // pred_region
      _
    $region5: #{tpu_custom_call.1} parent=1 // pred_fallthru
      _
    // Predicated region
    $region6: #{tpu_custom_call.1} parent=1 // pred_check
      _
    $region7: #{tpu_custom_call.1} parent=1 // pred_check_branch
      %13 = sbr.rel (0) target = $region9
    $region8: #{tpu_custom_call.1} parent=1 // pred_region
      _
    $region9: #{tpu_custom_call.1} parent=1 // pred_fallthru
      _
    %v14 = vld [vmem:[%s1] sm:$0x3]
    %v15 = vld [vmem:[%s1 + $0x2] sm:$0x3]
    %v16 = vld [vmem:[%s1 + $0x4] sm:$0x3]
    %v17 = vld [vmem:[%s1 + $0x6] sm:$0x3]
    %v18 = vld [vmem:[%s1 + $0x8] sm:$0x3]
    %v19 = vld [vmem:[%s1 + $0xa] sm:$0x3]
    %v20 = vld [vmem:[%s1 + $0xc] sm:$0x3]
    %v21 = vld [vmem:[%s1 + $0xe] sm:$0x3]
    %v22 = vld [vmem:[%s2] sm:$0x1]
    %v23 = vld [vmem:[%s2 + $0x1] sm:$0x1]
    %v24 = vld [vmem:[%s2 + $0x2] sm:$0x1]
    %v25 = vld [vmem:[%s2 + $0x3] sm:$0x1]
    %v26 = vld [vmem:[%s2 + $0x4] sm:$0x1]
    %v27 = vld [vmem:[%s2 + $0x5] sm:$0x1]
    %v28 = vld [vmem:[%s2 + $0x6] sm:$0x1]
    %v29 = vld [vmem:[%s2 + $0x7] sm:$0x1]
    %v38 = vlaneseq
    %v39 = vshrl.u32 %v38, 7
    %v40 = vsub.s32 0, %v39
    %v41 = vrot.slane %v22, %v40
    %v42 = vlaneseq
    %v43 = vshrl.u32 %v42, 7
    %v44 = vsub.s32 0, %v43
    %v45 = vrot.slane %v23, %v44
    %v46 = vlaneseq
    %v47 = vshrl.u32 %v46, 7
    %v48 = vsub.s32 0, %v47
    %v49 = vrot.slane %v24, %v48
    %v50 = vlaneseq
    %v51 = vshrl.u32 %v50, 7
    %v52 = vsub.s32 0, %v51
    %v53 = vrot.slane %v25, %v52
    %v54 = vlaneseq
    %v55 = vshrl.u32 %v54, 7
    %v56 = vsub.s32 0, %v55
    %v57 = vrot.slane %v26, %v56
    %v58 = vlaneseq
    %v59 = vshrl.u32 %v58, 7
    %v60 = vsub.s32 0, %v59
    %v61 = vrot.slane %v27, %v60
    %v62 = vlaneseq
    %v63 = vshrl.u32 %v62, 7
    %v64 = vsub.s32 0, %v63
    %v65 = vrot.slane %v28, %v64
    %v66 = vlaneseq
    %v67 = vshrl.u32 %v66, 7
    %v68 = vsub.s32 0, %v67
    %v69 = vrot.slane %v29, %v68
    %v78 = vadd.f32 %v14, %v41
    %v79 = vadd.f32 %v15, %v45
    %v80 = vadd.f32 %v16, %v49
    %v81 = vadd.f32 %v17, %v53
    %v82 = vadd.f32 %v18, %v57
    %v83 = vadd.f32 %v19, %v61
    %v84 = vadd.f32 %v20, %v65
    %v85 = vadd.f32 %v21, %v69
    %vm86 = vcmask 254976
    %87 = vst.msk [vmem:[#allocation4] sm:$0x3] %vm86, %v78
    %88 = vst.msk [vmem:[#allocation4 + $0x2] sm:$0x3] %vm86, %v79
    %89 = vst.msk [vmem:[#allocation4 + $0x4] sm:$0x3] %vm86, %v80
    %90 = vst.msk [vmem:[#allocation4 + $0x6] sm:$0x3] %vm86, %v81
    %91 = vst.msk [vmem:[#allocation4 + $0x8] sm:$0x3] %vm86, %v82
    %92 = vst.msk [vmem:[#allocation4 + $0xa] sm:$0x3] %vm86, %v83
    %93 = vst.msk [vmem:[#allocation4 + $0xc] sm:$0x3] %vm86, %v84
    %94 = vst.msk [vmem:[#allocation4 + $0xe] sm:$0x3] %vm86, %v85
    // Predicated region
    $region10: #{tpu_custom_call.1} parent=1 // pred_check
      _
    $region11: #{tpu_custom_call.1} parent=1 // pred_check_branch
      %96 = sbr.rel (0) target = $region13
    $region12: #{tpu_custom_call.1} parent=1 // pred_region
      %s98 = ssub.s32 256, 256
      %99 = vsyncadd [#allocation5], %s98
      %s100 = sshll.u32 [#allocation4], 4
      %s101 = int_to_ptr.vmem [resolvable:$true] %s100
      %106 = dma.vmem_to_hbm [thread:$0]  %s101, 256, %s3, [#allocation5], 32, 32, 2
    $region13: #{tpu_custom_call.1} parent=1 // pred_fallthru
      _
    // Predicated region
    $region14: #{tpu_custom_call.1} parent=1 // pred_check
      _
    $region15: #{tpu_custom_call.1} parent=1 // pred_check_branch
      %108 = sbr.rel (0) target = $region17
    $region16: #{tpu_custom_call.1} parent=1 // pred_region
      %109 = dma.done [#allocation5], 256
    $region17: #{tpu_custom_call.1} parent=1 // pred_fallthru
      _
    %110 = vsyncpa [#allocation5], 1

</llo_original>
